<compile_context>
chip_gen: v7x
topology: tpu7x:2x2x1
jax: 0.10.0
libtpu: 0.0.40
codegen_flags: <defaults>
</compile_context>

<pallas_src>
import functools

import jax
import jax.numpy as jnp
from jax.experimental import pallas as pl
from jax.experimental.pallas import tpu as pltpu

_TM = 128     # adj row tile (output rows per grid step)
_TK = 128     # adj column tile (reduction chunk)
_LANE = 128   # lane width; all padded dims are multiples of this
# TODO(synk): on v5e consider pipeline_mode=pl.Buffered(3) on the adj panel
# BlockSpec (lowest HBM BW chip) once panel DMA shows up as exposed.


def _round_up(v, m):
    return ((v + m - 1) // m) * m


def _vmem_limit(bytes_needed):
    # 2x headroom for double-buffered pipelining; clamp so the limit is valid
    # on every chip (v7x physical VMEM is 64 MiB per TensorCore).
    return int(min(max(2 * int(bytes_needed), 32 * 1024 * 1024),
                   64 * 1024 * 1024))


# ---------------------------------------------------------------------------
# Kernel 1: h = relu(adj @ feat [@ W1] + b1); also emits support = h @ W2.
#   apply_w1=True  : feat = x      -> (adj @ x) @ W1   (F_pad <= H_pad)
#   apply_w1=False : feat = x @ W1 ->  adj @ (x @ W1)  (feature-heavy graphs)
# Grid: (row_tiles, k_tiles); k (adj columns) is the reduction axis.
# ---------------------------------------------------------------------------
def _gcn_layer1_kernel(adj_ref, feat_ref, w1_ref, b1_ref, w2_ref,
                       x1_ref, sup_ref, acc_ref, *, apply_w1):
    k = pl.program_id(1)

    @pl.when(k == 0)
    def _():
        acc_ref[...] = jnp.zeros_like(acc_ref)

    acc_ref[...] += jnp.dot(adj_ref[...], feat_ref[...],
                            preferred_element_type=jnp.float32)

    @pl.when(k == pl.num_programs(1) - 1)
    def _():
        t = acc_ref[...]
        if apply_w1:
            t = jnp.dot(t.astype(jnp.bfloat16), w1_ref[...],
                        preferred_element_type=jnp.float32)
        h = jnp.maximum(t + b1_ref[...], 0.0)          # bias + ReLU in f32
        x1_ref[...] = h.astype(x1_ref.dtype)
        sup_ref[...] = jnp.dot(h.astype(jnp.bfloat16), w2_ref[...],
                               preferred_element_type=jnp.float32
                               ).astype(sup_ref.dtype)


# ---------------------------------------------------------------------------
# Kernel 2: logits = adj @ support + b2 ; masked log_softmax over real classes.
# ---------------------------------------------------------------------------
def _gcn_layer2_kernel(adj_ref, sup_ref, b2_ref, logp_ref, acc_ref, *,
                       num_class):
    k = pl.program_id(1)

    @pl.when(k == 0)
    def _():
        acc_ref[...] = jnp.zeros_like(acc_ref)

    acc_ref[...] += jnp.dot(adj_ref[...], sup_ref[...],
                            preferred_element_type=jnp.float32)

    @pl.when(k == pl.num_programs(1) - 1)
    def _():
        logits = acc_ref[...] + b2_ref[...]             # f32
        rows, c_pad = logits.shape
        col = jax.lax.broadcasted_iota(jnp.int32, (rows, c_pad), 1)
        valid = col < num_class
        masked = jnp.where(valid, logits, jnp.float32(-1e30))
        m = jnp.max(masked, axis=1, keepdims=True)
        z = masked - m
        e = jnp.where(valid, jnp.exp(z), 0.0)
        lse = jnp.log(jnp.sum(e, axis=1, keepdims=True))
        logp_ref[...] = (z - lse).astype(logp_ref.dtype)


# ---------------------------------------------------------------------------
# Parameter preparation (padding + bf16 casts hoisted out of the call path).
# ---------------------------------------------------------------------------
def prepare_params(params):
    f, h = params["w1"].shape
    _, c = params["w2"].shape
    fp, hp, cp = (_round_up(d, _LANE) for d in (f, h, c))
    w1_bf16 = jnp.zeros((fp, hp), jnp.bfloat16).at[:f, :h].set(
        params["w1"].astype(jnp.bfloat16))
    b1 = jnp.zeros((1, hp), jnp.float32).at[:, :h].set(params["b1"])
    w2_bf16 = jnp.zeros((hp, cp), jnp.bfloat16).at[:h, :c].set(
        params["w2"].astype(jnp.bfloat16))
    b2 = jnp.zeros((1, cp), jnp.float32).at[:, :c].set(params["b2"])
    return {
        "w1_bf16": w1_bf16, "b1": b1, "w2_bf16": w2_bf16, "b2": b2,
        "w1_f32": params["w1"],            # for the adj@(x@W1) association
        "dims": (f, h, c, fp, hp, cp),
    }


# ---------------------------------------------------------------------------
# Forward wrapper (eval mode). Returns (log_probs, x1) like GCN_hook.forward.
# ---------------------------------------------------------------------------
def gcn_hook_forward(x, adj, prepared):
    # TODO(synk): F.dropout with training=True (stochastic mask via
    # pltpu.prng_seed/prng_random_bits + 1/(1-p) scaling) not reproduced;
    # eval-mode identity is used here.
    f, h, c, fp, hp, cp = prepared["dims"]
    n = x.shape[0]
    np_ = _round_up(n, max(_TM, _TK))
    nr, nk = np_ // _TM, np_ // _TK

    # Zero padding is exact: padded adj columns are zero (so garbage padded
    # rows of h/support never contribute), padded feature/hidden columns hit
    # zero weight rows, and padded class columns are masked out of the
    # log_softmax. Padded output rows are sliced away below.
    adj_p = (jnp.zeros((np_, np_), jnp.float32).at[:n, :n].set(adj)
             .astype(jnp.bfloat16))

    apply_w1 = fp <= hp                    # n^2 term is n^2 * min(fp, hp)
    if apply_w1:                           # (adj @ x) @ W1
        feat = (jnp.zeros((np_, fp), jnp.float32).at[:n, :f].set(x)
                .astype(jnp.bfloat16))
        fdim = fp
    else:                                  # adj @ (x @ W1)
        xw1 = jnp.dot(x, prepared["w1_f32"],
                      preferred_element_type=jnp.float32)
        feat = (jnp.zeros((np_, hp), jnp.float32).at[:n, :h].set(xw1)
                .astype(jnp.bfloat16))
        fdim = hp

    # ---- layer 1 (+ ReLU, + support = h @ W2 epilogue) ----------------------
    vmem1 = _vmem_limit(
        2 * _TM * _TK * 2 + 2 * _TK * fdim * 2        # adj / feat panels (x2)
        + fp * hp * 2 + hp * 4 + hp * cp * 2          # W1, b1, W2 (resident)
        + 2 * _TM * hp * 4 + 2 * _TM * cp * 2         # x1 / support out (x2)
        + _TM * fdim * 4)                             # f32 accumulator
    flops1 = (2 * np_ * np_ * fdim
              + (2 * np_ * fp * hp if apply_w1 else 0)
              + 2 * np_ * hp * cp)
    bytes1 = (np_ * np_ * 2 + np_ * fdim * 2 + fp * hp * 2 + hp * cp * 2
              + np_ * hp * 4 + np_ * cp * 2)

    x1_p, sup_p = pl.pallas_call(
        functools.partial(_gcn_layer1_kernel, apply_w1=apply_w1),
        grid=(nr, nk),
        in_specs=[
            pl.BlockSpec((_TM, _TK), lambda i, k: (i, k)),    # adj panel
            pl.BlockSpec((_TK, fdim), lambda i, k: (k, 0)),   # feat panel
            pl.BlockSpec((fp, hp), lambda i, k: (0, 0)),      # W1 (bf16)
            pl.BlockSpec((1, hp), lambda i, k: (0, 0)),       # b1 (f32)
            pl.BlockSpec((hp, cp), lambda i, k: (0, 0)),      # W2 (bf16)
        ],
        out_specs=(
            pl.BlockSpec((_TM, hp), lambda i, k: (i, 0)),     # x1 (f32)
            pl.BlockSpec((_TM, cp), lambda i, k: (i, 0)),     # support (bf16)
        ),
        out_shape=(jax.ShapeDtypeStruct((np_, hp), jnp.float32),
                   jax.ShapeDtypeStruct((np_, cp), jnp.bfloat16)),
        scratch_shapes=[pltpu.VMEM((_TM, fdim), jnp.float32)],
        compiler_params=pltpu.CompilerParams(
            dimension_semantics=("parallel", "arbitrary"),
            vmem_limit_bytes=vmem1),
        cost_estimate=pl.CostEstimate(flops=int(flops1), transcendentals=0,
                                      bytes_accessed=int(bytes1)),
    )(adj_p, feat, prepared["w1_bf16"], prepared["b1"], prepared["w2_bf16"])

    # ---- layer 2 (+ masked log_softmax) -------------------------------------
    vmem2 = _vmem_limit(
        2 * _TM * _TK * 2 + 2 * _TK * cp * 2 + cp * 4
        + 2 * _TM * cp * 4 + _TM * cp * 4)
    flops2 = 2 * np_ * np_ * cp
    bytes2 = np_ * np_ * 2 + np_ * cp * 2 + np_ * cp * 4

    logp_p = pl.pallas_call(
        functools.partial(_gcn_layer2_kernel, num_class=c),
        grid=(nr, nk),
        in_specs=[
            pl.BlockSpec((_TM, _TK), lambda i, k: (i, k)),    # adj panel
            pl.BlockSpec((_TK, cp), lambda i, k: (k, 0)),     # support panel
            pl.BlockSpec((1, cp), lambda i, k: (0, 0)),       # b2 (f32)
        ],
        out_specs=pl.BlockSpec((_TM, cp), lambda i, k: (i, 0)),
        out_shape=jax.ShapeDtypeStruct((np_, cp), jnp.float32),
        scratch_shapes=[pltpu.VMEM((_TM, cp), jnp.float32)],
        compiler_params=pltpu.CompilerParams(
            dimension_semantics=("parallel", "arbitrary"),
            vmem_limit_bytes=vmem2),
        cost_estimate=pl.CostEstimate(flops=int(flops2),
                                      transcendentals=int(np_ * (cp + 1)),
                                      bytes_accessed=int(bytes2)),
    )(adj_p, sup_p, prepared["b2"])

    return logp_p[:n, :c], x1_p[:n, :h]


# ---------------------------------------------------------------------------
# Deterministic parameter init (Kipf-style uniform, stdv = 1/sqrt(out_features))
# ---------------------------------------------------------------------------
def init_params(key, num_feature, num_hidden, num_class):
    k1, k2, k3, k4 = jax.random.split(key, 4)
    stdv1 = 1.0 / jnp.sqrt(num_hidden)
    stdv2 = 1.0 / jnp.sqrt(num_class)
    return {
        "w1": jax.random.uniform(k1, (num_feature, num_hidden), jnp.float32,
                                 -stdv1, stdv1),
        "b1": jax.random.uniform(k2, (num_hidden,), jnp.float32, -stdv1, stdv1),
        "w2": jax.random.uniform(k3, (num_hidden, num_class), jnp.float32,
                                 -stdv2, stdv2),
        "b2": jax.random.uniform(k4, (num_class,), jnp.float32, -stdv2, stdv2),
    }


if __name__ == "__main__":
    key = jax.random.PRNGKey(0)
    k_x, k_adj, k_p = jax.random.split(key, 3)

    N = 16            # number of graph nodes
    NUM_FEATURE = 8
    NUM_HIDDEN = 32
    NUM_CLASS = 4

    x = jax.random.normal(k_x, (N, NUM_FEATURE), jnp.float32)

    # Symmetric row-normalized adjacency with self-loops (typical GCN input).
    a = (jax.random.uniform(k_adj, (N, N)) < 0.3).astype(jnp.float32)
    a = jnp.maximum(a, a.T) + jnp.eye(N, dtype=jnp.float32)
    adj = a / jnp.sum(a, axis=1, keepdims=True)

    params = init_params(k_p, NUM_FEATURE, NUM_HIDDEN, NUM_CLASS)
    prepared = prepare_params(params)       # padded/cast once (hoisted)

    log_probs, x1 = gcn_hook_forward(x, adj, prepared)
    jax.block_until_ready((log_probs, x1))

    # Sanity check against a plain f32 JAX reference.  Tolerance is loosened
    # because the kernel uses bf16 MXU operands (f32 accumulation).
    ref_h = jnp.maximum(adj @ (x @ params["w1"]) + params["b1"], 0.0)
    ref_logits = adj @ (ref_h @ params["w2"]) + params["b2"]
    ref_lp = jax.nn.log_softmax(ref_logits, axis=1)
    assert log_probs.shape == (N, NUM_CLASS) and x1.shape == (N, NUM_HIDDEN)
    assert jnp.allclose(x1, ref_h, atol=1e-1, rtol=1e-1), "hidden mismatch"
    assert jnp.allclose(log_probs, ref_lp, atol=1e-1, rtol=1e-1), \
        "log_softmax mismatch"

    print("KERNEL_OK")
</pallas_src>

<mosaic_0001>
module attributes {stable_mosaic.version = 11 : i64} {
  func.func @_gcn_layer1_kernel(%arg0: i32, %arg1: i32, %arg2: memref<128x128xbf16, #tpu.memory_space<vmem>>, %arg3: memref<128x128xbf16, #tpu.memory_space<vmem>>, %arg4: memref<128x128xbf16, #tpu.memory_space<vmem>>, %arg5: memref<1x128xf32, #tpu.memory_space<vmem>>, %arg6: memref<128x128xbf16, #tpu.memory_space<vmem>>, %arg7: memref<128x128xf32, #tpu.memory_space<vmem>>, %arg8: memref<128x128xbf16, #tpu.memory_space<vmem>>, %arg9: memref<128x128xf32, #tpu.memory_space<vmem>>) attributes {dimension_semantics = [#tpu.dimension_semantics<parallel>, #tpu.dimension_semantics<arbitrary>], iteration_bounds = array<i64: 1, 1>, scalar_prefetch = 0 : i64, scratch_operands = 1 : i64, tpu.core_type = #tpu.core_type<tc>, window_params = [{transform_indices = @transform_0, window_bounds = array<i64: 128, 128>}, {transform_indices = @transform_1, window_bounds = array<i64: 128, 128>}, {pipeline_mode = #tpu.pipeline_mode<synchronous>, transform_indices = @transform_2, window_bounds = array<i64: 128, 128>}, {pipeline_mode = #tpu.pipeline_mode<synchronous>, transform_indices = @transform_3, window_bounds = array<i64: 1, 128>}, {pipeline_mode = #tpu.pipeline_mode<synchronous>, transform_indices = @transform_4, window_bounds = array<i64: 128, 128>}, {transform_indices = @transform_5, window_bounds = array<i64: 128, 128>}, {transform_indices = @transform_6, window_bounds = array<i64: 128, 128>}]} {
    %c0_i32 = arith.constant 0 : i32
    %0 = arith.cmpi eq, %arg1, %c0_i32 : i32
    %1 = arith.extui %0 : i1 to i32
    %c0_i32_0 = arith.constant 0 : i32
    %2 = arith.cmpi ne, %1, %c0_i32_0 : i32
    scf.if %2 {
      %cst_10 = arith.constant 0.000000e+00 : f32
      %12 = vector.broadcast %cst_10 : f32 to vector<128x128xf32>
      %c0_11 = arith.constant 0 : index
      %c0_12 = arith.constant 0 : index
      %13 = vector.load %arg9[%c0_11, %c0_12] : memref<128x128xf32, #tpu.memory_space<vmem>>, vector<128x128xf32>
      tpu.vector_store %arg9[%c0_11, %c0_12], %12 {strides = array<i32>} : memref<128x128xf32, #tpu.memory_space<vmem>>, vector<128x128xf32>,
    } else {
    }
    %c0 = arith.constant 0 : index
    %c0_1 = arith.constant 0 : index
    %3 = vector.load %arg9[%c0, %c0_1] : memref<128x128xf32, #tpu.memory_space<vmem>>, vector<128x128xf32>
    %c0_2 = arith.constant 0 : index
    %c0_3 = arith.constant 0 : index
    %4 = vector.load %arg2[%c0_2, %c0_3] : memref<128x128xbf16, #tpu.memory_space<vmem>>, vector<128x128xbf16>
    %c0_4 = arith.constant 0 : index
    %c0_5 = arith.constant 0 : index
    %5 = vector.load %arg3[%c0_4, %c0_5] : memref<128x128xbf16, #tpu.memory_space<vmem>>, vector<128x128xbf16>
    %cst = arith.constant dense<0.000000e+00> : vector<128x128xf32>
    %6 = tpu.matmul %4, %5, %cst {dimension_numbers = #tpu.dot_dimension_numbers<[1], [0], [0], [1], [0, 0, 1, 1], [], []>} : vector<128x128xbf16>, vector<128x128xbf16>, vector<128x128xf32> -> vector<128x128xf32>
    %7 = arith.addf %3, %6 : vector<128x128xf32>
    %c0_6 = arith.constant 0 : index
    %c0_7 = arith.constant 0 : index
    %8 = vector.load %arg9[%c0_6, %c0_7] : memref<128x128xf32, #tpu.memory_space<vmem>>, vector<128x128xf32>
    tpu.vector_store %arg9[%c0_6, %c0_7], %7 {strides = array<i32>} : memref<128x128xf32, #tpu.memory_space<vmem>>, vector<128x128xf32>,
    %c0_i32_8 = arith.constant 0 : i32
    %9 = arith.cmpi eq, %arg1, %c0_i32_8 : i32
    %10 = arith.extui %9 : i1 to i32
    %c0_i32_9 = arith.constant 0 : i32
    %11 = arith.cmpi ne, %10, %c0_i32_9 : i32
    scf.if %11 {
      %c0_10 = arith.constant 0 : index
      %c0_11 = arith.constant 0 : index
      %12 = vector.load %arg9[%c0_10, %c0_11] : memref<128x128xf32, #tpu.memory_space<vmem>>, vector<128x128xf32>
      %13 = arith.truncf %12 : vector<128x128xf32> to vector<128x128xbf16>
      %c0_12 = arith.constant 0 : index
      %c0_13 = arith.constant 0 : index
      %14 = vector.load %arg4[%c0_12, %c0_13] : memref<128x128xbf16, #tpu.memory_space<vmem>>, vector<128x128xbf16>
      %cst_14 = arith.constant dense<0.000000e+00> : vector<128x128xf32>
      %15 = tpu.matmul %13, %14, %cst_14 {dimension_numbers = #tpu.dot_dimension_numbers<[1], [0], [0], [1], [0, 0, 1, 1], [], []>} : vector<128x128xbf16>, vector<128x128xbf16>, vector<128x128xf32> -> vector<128x128xf32>
      %c0_15 = arith.constant 0 : index
      %c0_16 = arith.constant 0 : index
      %16 = vector.load %arg5[%c0_15, %c0_16] : memref<1x128xf32, #tpu.memory_space<vmem>>, vector<1x128xf32>
      %17 = vector.broadcast %16 : vector<1x128xf32> to vector<128x128xf32>
      %18 = arith.addf %15, %17 : vector<128x128xf32>
      %cst_17 = arith.constant 0.000000e+00 : f32
      %19 = vector.broadcast %cst_17 : f32 to vector<128x128xf32>
      %20 = arith.maximumf %18, %19 : vector<128x128xf32>
      %c0_18 = arith.constant 0 : index
      %c0_19 = arith.constant 0 : index
      %21 = vector.load %arg7[%c0_18, %c0_19] : memref<128x128xf32, #tpu.memory_space<vmem>>, vector<128x128xf32>
      tpu.vector_store %arg7[%c0_18, %c0_19], %20 {strides = array<i32>} : memref<128x128xf32, #tpu.memory_space<vmem>>, vector<128x128xf32>,
      %22 = arith.truncf %20 : vector<128x128xf32> to vector<128x128xbf16>
      %c0_20 = arith.constant 0 : index
      %c0_21 = arith.constant 0 : index
      %23 = vector.load %arg6[%c0_20, %c0_21] : memref<128x128xbf16, #tpu.memory_space<vmem>>, vector<128x128xbf16>
      %cst_22 = arith.constant dense<0.000000e+00> : vector<128x128xf32>
      %24 = tpu.matmul %22, %23, %cst_22 {dimension_numbers = #tpu.dot_dimension_numbers<[1], [0], [0], [1], [0, 0, 1, 1], [], []>} : vector<128x128xbf16>, vector<128x128xbf16>, vector<128x128xf32> -> vector<128x128xf32>
      %25 = arith.truncf %24 : vector<128x128xf32> to vector<128x128xbf16>
      %c0_23 = arith.constant 0 : index
      %c0_24 = arith.constant 0 : index
      %26 = vector.load %arg8[%c0_23, %c0_24] : memref<128x128xbf16, #tpu.memory_space<vmem>>, vector<128x128xbf16>
      tpu.vector_store %arg8[%c0_23, %c0_24], %25 {strides = array<i32>} : memref<128x128xbf16, #tpu.memory_space<vmem>>, vector<128x128xbf16>,
    } else {
    }
    return
  }
  func.func @transform_0(%arg0: i32, %arg1: i32) -> (i32, i32) {
    %c0_i32 = arith.constant 0 : i32
    return %arg0, %arg1 : i32, i32
  }
  func.func @transform_1(%arg0: i32, %arg1: i32) -> (i32, i32) {
    %c0_i32 = arith.constant 0 : i32
    %c0_i32_0 = arith.constant 0 : i32
    return %arg1, %c0_i32 : i32, i32
  }
  func.func @transform_2(%arg0: i32, %arg1: i32) -> (i32, i32) {
    %c0_i32 = arith.constant 0 : i32
    %c0_i32_0 = arith.constant 0 : i32
    %c0_i32_1 = arith.constant 0 : i32
    return %c0_i32, %c0_i32_0 : i32, i32
  }
  func.func @transform_3(%arg0: i32, %arg1: i32) -> (i32, i32) {
    %c0_i32 = arith.constant 0 : i32
    %c0_i32_0 = arith.constant 0 : i32
    %c0_i32_1 = arith.constant 0 : i32
    return %c0_i32, %c0_i32_0 : i32, i32
  }
  func.func @transform_4(%arg0: i32, %arg1: i32) -> (i32, i32) {
    %c0_i32 = arith.constant 0 : i32
    %c0_i32_0 = arith.constant 0 : i32
    %c0_i32_1 = arith.constant 0 : i32
    return %c0_i32, %c0_i32_0 : i32, i32
  }
  func.func @transform_5(%arg0: i32, %arg1: i32) -> (i32, i32) {
    %c0_i32 = arith.constant 0 : i32
    %c0_i32_0 = arith.constant 0 : i32
    return %arg0, %c0_i32 : i32, i32
  }
  func.func @transform_6(%arg0: i32, %arg1: i32) -> (i32, i32) {
    %c0_i32 = arith.constant 0 : i32
    %c0_i32_0 = arith.constant 0 : i32
    return %arg0, %c0_i32 : i32, i32
  }
}

</mosaic_0001>

<llo_original>
// kernel: tpu_custom_call.1
$region0: #{tpu_custom_call.1}
  #allocation0 [shape = 'u32[]', space=smem, size = 0x4, offset = 0x4, fixed_abs, tag = 'smem constant byte address 0x4 - core index']
  #allocation1 [shape = 'u32[144,128]{1,0:T(1,128)}', space=vmem, size = 0x12000, scoped, tag = 'internal scratch']
  #allocation2 [shape = 'f32[128,128]{1,0:T(8,128)}', space=vmem, size = 0x10000, scoped, tag = 'scratch operand']
  %s0 = inlined_call_operand.hbm [shape: bf16[128,128], index: 0, kind: input, shape index: {}]
  %s1 = inlined_call_operand.hbm [shape: bf16[128,128], index: 1, kind: input, shape index: {}]
  %s2 = inlined_call_operand.hbm [shape: bf16[128,128], index: 2, kind: input, shape index: {}]
  %s3 = inlined_call_operand.vmem [shape: f32[1,128], index: 3, kind: input, shape index: {}]
  %s4 = inlined_call_operand.hbm [shape: bf16[128,128], index: 4, kind: input, shape index: {}]
  %s5 = inlined_call_operand.hbm [shape: f32[128,128], index: 5, kind: output, shape index: {0}]
  %s6 = inlined_call_operand.hbm [shape: bf16[128,128], index: 6, kind: output, shape index: {1}]
  %7 = xla_tuple %s5, %s6
  %s8 = sld [smem:[#allocation0]]
  $region62: #{tpu_custom_call.1} parent=0
    _
  %s10 = ssub.s32 1, %s8
  %s11 = scalar_select 0, %s10, %s8
  $region1: #{tpu_custom_call.1} parent=0
    #allocation3 [shape = 'u8[32768]{0}', space=vmem, size = 0x8000, scoped, tag = 'input window, operand 0, single buffered']
    #allocation4 [shape = 's32[1]{0}', space=sflag, size = 0x4, scoped, tag = 'scoped memory for tpu_custom_call.1']
    #allocation5 [shape = 's32[1]{0}', space=sflag, size = 0x4, scoped, tag = 'scoped memory for tpu_custom_call.1']
    #allocation6 [shape = 'u8[32768]{0}', space=vmem, size = 0x8000, scoped, tag = 'input window, operand 1, single buffered']
    #allocation7 [shape = 's32[1]{0}', space=sflag, size = 0x4, scoped, tag = 'scoped memory for tpu_custom_call.1']
    #allocation8 [shape = 'u8[32768]{0}', space=vmem, size = 0x8000, scoped, tag = 'input window, operand 2, single buffered']
    #allocation9 [shape = 'u8[32768]{0}', space=vmem, size = 0x8000, scoped, tag = 'input window, operand 4, single buffered']
    #allocation10 [shape = 's32[1]{0}', space=sflag, size = 0x4, scoped, tag = 'scoped memory for tpu_custom_call.1']
    #allocation11 [shape = 'u8[65536]{0}', space=vmem, size = 0x10000, scoped, tag = 'output window, operand 0, single buffered']
    #allocation12 [shape = 'u8[32768]{0}', space=vmem, size = 0x8000, scoped, tag = 'output window, operand 1, single buffered']
    #allocation13 [shape = 's32[1]{0}', space=sflag, size = 0x4, scoped, tag = 'scoped memory for tpu_custom_call.1']
    %12 = vsyncpa [#allocation4], 0
    %13 = vsyncpa [#allocation7], 0
    %14 = vsyncpa [#allocation10], 0
    %15 = vsyncpa [#allocation5], 0
    %16 = vsyncpa [#allocation13], 0
    // Predicated region
    $region2: #{tpu_custom_call.1} parent=1 // pred_check
      _
    $region3: #{tpu_custom_call.1} parent=1 // pred_check_branch
      %18 = sbr.rel (0) target = $region5
    $region4: #{tpu_custom_call.1} parent=1 // pred_region
      %s20 = ssub.s32 1024, 1024
      %21 = vsyncadd [#allocation4], %s20
      %s22 = sshll.u32 [#allocation3], 4
      %s23 = int_to_ptr.vmem [resolvable:$true] %s22
      %28 = dma.hbm_to_vmem [thread:$0]  %s0, 1024, %s23, [#allocation4], 64, 64, 4
    $region5: #{tpu_custom_call.1} parent=1 // pred_fallthru
      _
    // Predicated region
    $region6: #{tpu_custom_call.1} parent=1 // pred_check
      _
    $region7: #{tpu_custom_call.1} parent=1 // pred_check_branch
      %30 = sbr.rel (0) target = $region9
    $region8: #{tpu_custom_call.1} parent=1 // pred_region
      %s32 = ssub.s32 1024, 1024
      %33 = vsyncadd [#allocation7], %s32
      %s34 = sshll.u32 [#allocation6], 4
      %s35 = int_to_ptr.vmem [resolvable:$true] %s34
      %40 = dma.hbm_to_vmem [thread:$0]  %s1, 1024, %s35, [#allocation7], 64, 64, 4
    $region9: #{tpu_custom_call.1} parent=1 // pred_fallthru
      _
    // Predicated region
    $region10: #{tpu_custom_call.1} parent=1 // pred_check
      _
    $region11: #{tpu_custom_call.1} parent=1 // pred_check_branch
      %42 = sbr.rel (0) target = $region13
    $region12: #{tpu_custom_call.1} parent=1 // pred_region
      %s44 = ssub.s32 1024, 1024
      %45 = vsyncadd [#allocation7], %s44
      %s46 = sshll.u32 [#allocation8], 4
      %s47 = int_to_ptr.vmem [resolvable:$true] %s46
      %52 = dma.hbm_to_vmem [thread:$0]  %s2, 1024, %s47, [#allocation7], 64, 64, 4
    $region13: #{tpu_custom_call.1} parent=1 // pred_fallthru
      _
    // Predicated region
    $region14: #{tpu_custom_call.1} parent=1 // pred_check
      _
    $region15: #{tpu_custom_call.1} parent=1 // pred_check_branch
      %54 = sbr.rel (0) target = $region17
    $region16: #{tpu_custom_call.1} parent=1 // pred_region
      _
    $region17: #{tpu_custom_call.1} parent=1 // pred_fallthru
      _
    // Predicated region
    $region18: #{tpu_custom_call.1} parent=1 // pred_check
      _
    $region19: #{tpu_custom_call.1} parent=1 // pred_check_branch
      %56 = sbr.rel (0) target = $region21
    $region20: #{tpu_custom_call.1} parent=1 // pred_region
      %s58 = ssub.s32 1024, 1024
      %59 = vsyncadd [#allocation10], %s58
      %s60 = sshll.u32 [#allocation9], 4
      %s61 = int_to_ptr.vmem [resolvable:$true] %s60
      %66 = dma.hbm_to_vmem [thread:$0]  %s4, 1024, %s61, [#allocation10], 64, 64, 4
    $region21: #{tpu_custom_call.1} parent=1 // pred_fallthru
      _
    // Predicated region
    $region22: #{tpu_custom_call.1} parent=1 // pred_check
      _
    $region23: #{tpu_custom_call.1} parent=1 // pred_check_branch
      %68 = sbr.rel (0) target = $region25
    $region24: #{tpu_custom_call.1} parent=1 // pred_region
      %69 = dma.done [#allocation4], 1024
    $region25: #{tpu_custom_call.1} parent=1 // pred_fallthru
      _
    // Predicated region
    $region26: #{tpu_custom_call.1} parent=1 // pred_check
      _
    $region27: #{tpu_custom_call.1} parent=1 // pred_check_branch
      %71 = sbr.rel (0) target = $region29
    $region28: #{tpu_custom_call.1} parent=1 // pred_region
      %72 = dma.done [#allocation7], 1024
    $region29: #{tpu_custom_call.1} parent=1 // pred_fallthru
      _
    // Predicated region
    $region30: #{tpu_custom_call.1} parent=1 // pred_check
      _
    $region31: #{tpu_custom_call.1} parent=1 // pred_check_branch
      %74 = sbr.rel (0) target = $region33
    $region32: #{tpu_custom_call.1} parent=1 // pred_region
      %75 = dma.done [#allocation7], 1024
    $region33: #{tpu_custom_call.1} parent=1 // pred_fallthru
      _
    // Predicated region
    $region34: #{tpu_custom_call.1} parent=1 // pred_check
      _
    $region35: #{tpu_custom_call.1} parent=1 // pred_check_branch
      %77 = sbr.rel (0) target = $region37
    $region36: #{tpu_custom_call.1} parent=1 // pred_region
      %78 = dma.done [#allocation10], 1024
    $region37: #{tpu_custom_call.1} parent=1 // pred_fallthru
      _
    %p80 = scmp.eq.s32.totalorder 0, 0
    // Predicated region
    $region38: #{tpu_custom_call.1} parent=1 // pred_check
      %p81 = pneg %p80
    $region39: #{tpu_custom_call.1} parent=1 // pred_check_branch
      %83 = sbr.rel (%p81) target = $region41
    $region40: #{tpu_custom_call.1} parent=1 // pred_region
      %84 = vst [vmem:[#allocation2] sm:$0xff] 0.0
      %85 = vst [vmem:[#allocation2 + $0x8] sm:$0xff] 0.0
      %86 = vst [vmem:[#allocation2 + $0x10] sm:$0xff] 0.0
      %87 = vst [vmem:[#allocation2 + $0x18] sm:$0xff] 0.0
      %88 = vst [vmem:[#allocation2 + $0x20] sm:$0xff] 0.0
      %89 = vst [vmem:[#allocation2 + $0x28] sm:$0xff] 0.0
      %90 = vst [vmem:[#allocation2 + $0x30] sm:$0xff] 0.0
      %91 = vst [vmem:[#allocation2 + $0x38] sm:$0xff] 0.0
      %92 = vst [vmem:[#allocation2 + $0x40] sm:$0xff] 0.0
      %93 = vst [vmem:[#allocation2 + $0x48] sm:$0xff] 0.0
      %94 = vst [vmem:[#allocation2 + $0x50] sm:$0xff] 0.0
      %95 = vst [vmem:[#allocation2 + $0x58] sm:$0xff] 0.0
      %96 = vst [vmem:[#allocation2 + $0x60] sm:$0xff] 0.0
      %97 = vst [vmem:[#allocation2 + $0x68] sm:$0xff] 0.0
      %98 = vst [vmem:[#allocation2 + $0x70] sm:$0xff] 0.0
      %99 = vst [vmem:[#allocation2 + $0x78] sm:$0xff] 0.0
    $region41: #{tpu_custom_call.1} parent=1 // pred_fallthru
      _
    %v100 = vld [vmem:[#allocation2] sm:$0xff]
    %v101 = vld [vmem:[#allocation2 + $0x8] sm:$0xff]
    %v102 = vld [vmem:[#allocation2 + $0x10] sm:$0xff]
    %v103 = vld [vmem:[#allocation2 + $0x18] sm:$0xff]
    %v104 = vld [vmem:[#allocation2 + $0x20] sm:$0xff]
    %v105 = vld [vmem:[#allocation2 + $0x28] sm:$0xff]
    %v106 = vld [vmem:[#allocation2 + $0x30] sm:$0xff]
    %v107 = vld [vmem:[#allocation2 + $0x38] sm:$0xff]
    %v108 = vld [vmem:[#allocation2 + $0x40] sm:$0xff]
    %v109 = vld [vmem:[#allocation2 + $0x48] sm:$0xff]
    %v110 = vld [vmem:[#allocation2 + $0x50] sm:$0xff]
    %v111 = vld [vmem:[#allocation2 + $0x58] sm:$0xff]
    %v112 = vld [vmem:[#allocation2 + $0x60] sm:$0xff]
    %v113 = vld [vmem:[#allocation2 + $0x68] sm:$0xff]
    %v114 = vld [vmem:[#allocation2 + $0x70] sm:$0xff]
    %v115 = vld [vmem:[#allocation2 + $0x78] sm:$0xff]
    %v116 = vld [vmem:[#allocation3] sm:$0xf]
    %v117 = vld [vmem:[#allocation3 + $0x4] sm:$0xf]
    %v118 = vld [vmem:[#allocation3 + $0x8] sm:$0xf]
    %v119 = vld [vmem:[#allocation3 + $0xc] sm:$0xf]
    %v120 = vld [vmem:[#allocation3 + $0x10] sm:$0xf]
    %v121 = vld [vmem:[#allocation3 + $0x14] sm:$0xf]
    %v122 = vld [vmem:[#allocation3 + $0x18] sm:$0xf]
    %v123 = vld [vmem:[#allocation3 + $0x1c] sm:$0xf]
    %v124 = vld [vmem:[#allocation3 + $0x20] sm:$0xf]
    %v125 = vld [vmem:[#allocation3 + $0x24] sm:$0xf]
    %v126 = vld [vmem:[#allocation3 + $0x28] sm:$0xf]
    %v127 = vld [vmem:[#allocation3 + $0x2c] sm:$0xf]
    %v128 = vld [vmem:[#allocation3 + $0x30] sm:$0xf]
    %v129 = vld [vmem:[#allocation3 + $0x34] sm:$0xf]
    %v130 = vld [vmem:[#allocation3 + $0x38] sm:$0xf]
    %v131 = vld [vmem:[#allocation3 + $0x3c] sm:$0xf]
    %v132 = vld [vmem:[#allocation6] sm:$0xf]
    %v133 = vld [vmem:[#allocation6 + $0x4] sm:$0xf]
    %v134 = vld [vmem:[#allocation6 + $0x8] sm:$0xf]
    %v135 = vld [vmem:[#allocation6 + $0xc] sm:$0xf]
    %v136 = vld [vmem:[#allocation6 + $0x10] sm:$0xf]
    %v137 = vld [vmem:[#allocation6 + $0x14] sm:$0xf]
    %v138 = vld [vmem:[#allocation6 + $0x18] sm:$0xf]
    %v139 = vld [vmem:[#allocation6 + $0x1c] sm:$0xf]
    %v140 = vld [vmem:[#allocation6 + $0x20] sm:$0xf]
    %v141 = vld [vmem:[#allocation6 + $0x24] sm:$0xf]
    %v142 = vld [vmem:[#allocation6 + $0x28] sm:$0xf]
    %v143 = vld [vmem:[#allocation6 + $0x2c] sm:$0xf]
    %v144 = vld [vmem:[#allocation6 + $0x30] sm:$0xf]
    %v145 = vld [vmem:[#allocation6 + $0x34] sm:$0xf]
    %v146 = vld [vmem:[#allocation6 + $0x38] sm:$0xf]
    %v147 = vld [vmem:[#allocation6 + $0x3c] sm:$0xf]
    %v164 = vunpack.c.l.b16 %v116
    %v165 = vunpack.c.l.b16 %v117
    %v166 = vunpack.c.l.b16 %v118
    %v167 = vunpack.c.l.b16 %v119
    %v168 = vunpack.c.l.b16 %v120
    %v169 = vunpack.c.l.b16 %v121
    %v170 = vunpack.c.l.b16 %v122
    %v171 = vunpack.c.l.b16 %v123
    %v172 = vunpack.c.l.b16 %v124
    %v173 = vunpack.c.l.b16 %v125
    %v174 = vunpack.c.l.b16 %v126
    %v175 = vunpack.c.l.b16 %v127
    %v176 = vunpack.c.l.b16 %v128
    %v177 = vunpack.c.l.b16 %v129
    %v178 = vunpack.c.l.b16 %v130
    %v179 = vunpack.c.l.b16 %v131
    %v180 = vpack.c.b16 %v165, %v164
    %v181 = vpack.c.b16 %v167, %v166
    %v182 = vpack.c.b16 %v169, %v168
    %v183 = vpack.c.b16 %v171, %v170
    %v184 = vpack.c.b16 %v173, %v172
    %v185 = vpack.c.b16 %v175, %v174
    %v186 = vpack.c.b16 %v177, %v176
    %v187 = vpack.c.b16 %v179, %v178
    %v212 = vunpack.c.l.b16 %v132
    %v213 = vunpack.c.l.b16 %v133
    %v214 = vunpack.c.l.b16 %v134
    %v215 = vunpack.c.l.b16 %v135
    %v216 = vunpack.c.l.b16 %v136
    %v217 = vunpack.c.l.b16 %v137
    %v218 = vunpack.c.l.b16 %v138
    %v219 = vunpack.c.l.b16 %v139
    %v220 = vunpack.c.l.b16 %v140
    %v221 = vunpack.c.l.b16 %v141
    %v222 = vunpack.c.l.b16 %v142
    %v223 = vunpack.c.l.b16 %v143
    %v224 = vunpack.c.l.b16 %v144
    %v225 = vunpack.c.l.b16 %v145
    %v226 = vunpack.c.l.b16 %v146
    %v227 = vunpack.c.l.b16 %v147
    %v228 = vpack.c.b16 %v213, %v212
    %v229 = vpack.c.b16 %v215, %v214
    %v230 = vpack.c.b16 %v217, %v216
    %v231 = vpack.c.b16 %v219, %v218
    %v232 = vpack.c.b16 %v221, %v220
    %v233 = vpack.c.b16 %v223, %v222
    %v234 = vpack.c.b16 %v225, %v224
    %v235 = vpack.c.b16 %v227, %v226
    %244 = vmatprep.subr.bf16.mxu0 0
    %245 = vmatpush1.bf16.msra.mxu0 %v228
    %246 = vmatprep.subr.bf16.mxu0 0
    %247 = vmatpush1.bf16.msra.mxu0 %v229
    %248 = vmatprep.subr.bf16.mxu0 0
    %249 = vmatpush1.bf16.msra.mxu0 %v230
    %250 = vmatprep.subr.bf16.mxu0 0
    %251 = vmatpush1.bf16.msra.mxu0 %v231
    %252 = vmatprep.subr.bf16.mxu0 0
    %253 = vmatpush1.bf16.msra.mxu0 %v232
    %254 = vmatprep.subr.bf16.mxu0 0
    %255 = vmatpush1.bf16.msra.mxu0 %v233
    %256 = vmatprep.subr.bf16.mxu0 0
    %257 = vmatpush1.bf16.msra.mxu0 %v234
    %258 = vmatprep.subr.bf16.mxu0 0
    %259 = vmatpush1.bf16.msra.mxu0 %v235
    %260 = vmatprep.subr.bf16.mxu0 0
    %261 = vmatpush1.bf16.msra.mxu0 0
    %262 = vmatprep.subr.bf16.mxu0 0
    %263 = vmatpush1.bf16.msra.mxu0 0
    %264 = vmatprep.subr.bf16.mxu0 0
    %265 = vmatpush1.bf16.msra.mxu0 0
    %266 = vmatprep.subr.bf16.mxu0 0
    %267 = vmatpush1.bf16.msra.mxu0 0
    %268 = vmatprep.subr.bf16.mxu0 0
    %269 = vmatpush1.bf16.msra.mxu0 0
    %270 = vmatprep.subr.bf16.mxu0 0
    %271 = vmatpush1.bf16.msra.mxu0 0
    %272 = vmatprep.subr.bf16.mxu0 0
    %273 = vmatpush1.bf16.msra.mxu0 0
    %274 = vmatprep.subr.bf16.mxu0 0
    %275 = vmatpush1.bf16.msra.mxu0 0
    %276 = vmatprep.mubr.bf16.mxu0 0
    %277 = vmatmul.mubr.bf16.gmra.mrb[0].mxu0 %v180
    %v278 = vpop.f32.mrb[0].mxu0
    %v279 = vadd.f32 0.0, %v278
    %v280 = vpop.f32.mrb[0].mxu0
    %v281 = vpop.f32.mrb[0].mxu0
    %v282 = vadd.f32 0.0, %v281
    %v283 = vpop.f32.mrb[0].mxu0
    %284 = vmatprep.mubr.bf16.mxu0 0
    %285 = vmatmul.mubr.bf16.gmra.mrb[0].mxu0 %v181
    %v286 = vpop.f32.mrb[0].mxu0
    %v287 = vadd.f32 0.0, %v286
    %v288 = vpop.f32.mrb[0].mxu0
    %v289 = vpop.f32.mrb[0].mxu0
    %v290 = vadd.f32 0.0, %v289
    %v291 = vpop.f32.mrb[0].mxu0
    %292 = vmatprep.mubr.bf16.mxu0 0
    %293 = vmatmul.mubr.bf16.gmra.mrb[0].mxu0 %v182
    %v294 = vpop.f32.mrb[0].mxu0
    %v295 = vadd.f32 0.0, %v294
    %v296 = vpop.f32.mrb[0].mxu0
    %v297 = vpop.f32.mrb[0].mxu0
    %v298 = vadd.f32 0.0, %v297
    %v299 = vpop.f32.mrb[0].mxu0
    %300 = vmatprep.mubr.bf16.mxu0 0
    %301 = vmatmul.mubr.bf16.gmra.mrb[0].mxu0 %v183
    %v302 = vpop.f32.mrb[0].mxu0
    %v303 = vadd.f32 0.0, %v302
    %v304 = vpop.f32.mrb[0].mxu0
    %v305 = vpop.f32.mrb[0].mxu0
    %v306 = vadd.f32 0.0, %v305
    %v307 = vpop.f32.mrb[0].mxu0
    %308 = vmatprep.mubr.bf16.mxu0 0
    %309 = vmatmul.mubr.bf16.gmra.mrb[0].mxu0 %v184
    %v310 = vpop.f32.mrb[0].mxu0
    %v311 = vadd.f32 0.0, %v310
    %v312 = vpop.f32.mrb[0].mxu0
    %v313 = vpop.f32.mrb[0].mxu0
    %v314 = vadd.f32 0.0, %v313
    %v315 = vpop.f32.mrb[0].mxu0
    %316 = vmatprep.mubr.bf16.mxu0 0
    %317 = vmatmul.mubr.bf16.gmra.mrb[0].mxu0 %v185
    %v318 = vpop.f32.mrb[0].mxu0
    %v319 = vadd.f32 0.0, %v318
    %v320 = vpop.f32.mrb[0].mxu0
    %v321 = vpop.f32.mrb[0].mxu0
    %v322 = vadd.f32 0.0, %v321
    %v323 = vpop.f32.mrb[0].mxu0
    %324 = vmatprep.mubr.bf16.mxu0 0
    %325 = vmatmul.mubr.bf16.gmra.mrb[0].mxu0 %v186
    %v326 = vpop.f32.mrb[0].mxu0
    %v327 = vadd.f32 0.0, %v326
    %v328 = vpop.f32.mrb[0].mxu0
    %v329 = vpop.f32.mrb[0].mxu0
    %v330 = vadd.f32 0.0, %v329
    %v331 = vpop.f32.mrb[0].mxu0
    %332 = vmatprep.mubr.bf16.mxu0 0
    %333 = vmatmul.mubr.bf16.gmra.mrb[0].mxu0 %v187
    %v334 = vpop.f32.mrb[0].mxu0
    %v335 = vadd.f32 0.0, %v334
    %v336 = vpop.f32.mrb[0].mxu0
    %v337 = vpop.f32.mrb[0].mxu0
    %v338 = vadd.f32 0.0, %v337
    %v339 = vpop.f32.mrb[0].mxu0
    %340 = vdwg.mxu0
    %v341 = vadd.f32 %v100, %v279
    %v342 = vadd.f32 %v101, %v282
    %v343 = vadd.f32 %v102, %v287
    %v344 = vadd.f32 %v103, %v290
    %v345 = vadd.f32 %v104, %v295
    %v346 = vadd.f32 %v105, %v298
    %v347 = vadd.f32 %v106, %v303
    %v348 = vadd.f32 %v107, %v306
    %v349 = vadd.f32 %v108, %v311
    %v350 = vadd.f32 %v109, %v314
    %v351 = vadd.f32 %v110, %v319
    %v352 = vadd.f32 %v111, %v322
    %v353 = vadd.f32 %v112, %v327
    %v354 = vadd.f32 %v113, %v330
    %v355 = vadd.f32 %v114, %v335
    %v356 = vadd.f32 %v115, %v338
    %357 = vst [vmem:[#allocation2] sm:$0xff] %v341
    %358 = vst [vmem:[#allocation2 + $0x8] sm:$0xff] %v342
    %359 = vst [vmem:[#allocation2 + $0x10] sm:$0xff] %v343
    %360 = vst [vmem:[#allocation2 + $0x18] sm:$0xff] %v344
    %361 = vst [vmem:[#allocation2 + $0x20] sm:$0xff] %v345
    %362 = vst [vmem:[#allocation2 + $0x28] sm:$0xff] %v346
    %363 = vst [vmem:[#allocation2 + $0x30] sm:$0xff] %v347
    %364 = vst [vmem:[#allocation2 + $0x38] sm:$0xff] %v348
    %365 = vst [vmem:[#allocation2 + $0x40] sm:$0xff] %v349
    %366 = vst [vmem:[#allocation2 + $0x48] sm:$0xff] %v350
    %367 = vst [vmem:[#allocation2 + $0x50] sm:$0xff] %v351
    %368 = vst [vmem:[#allocation2 + $0x58] sm:$0xff] %v352
    %369 = vst [vmem:[#allocation2 + $0x60] sm:$0xff] %v353
    %370 = vst [vmem:[#allocation2 + $0x68] sm:$0xff] %v354
    %371 = vst [vmem:[#allocation2 + $0x70] sm:$0xff] %v355
    %372 = vst [vmem:[#allocation2 + $0x78] sm:$0xff] %v356
    // Predicated region
    $region42: #{tpu_custom_call.1} parent=1 // pred_check
      %p373 = pneg %p80
    $region43: #{tpu_custom_call.1} parent=1 // pred_check_branch
      %375 = sbr.rel (%p373) target = $region45
    $region44: #{tpu_custom_call.1} parent=1 // pred_region
      %v376 = vld [vmem:[#allocation2] sm:$0xff]
      %v377 = vld [vmem:[#allocation2 + $0x8] sm:$0xff]
      %v378 = vld [vmem:[#allocation2 + $0x10] sm:$0xff]
      %v379 = vld [vmem:[#allocation2 + $0x18] sm:$0xff]
      %v380 = vld [vmem:[#allocation2 + $0x20] sm:$0xff]
      %v381 = vld [vmem:[#allocation2 + $0x28] sm:$0xff]
      %v382 = vld [vmem:[#allocation2 + $0x30] sm:$0xff]
      %v383 = vld [vmem:[#allocation2 + $0x38] sm:$0xff]
      %v384 = vld [vmem:[#allocation2 + $0x40] sm:$0xff]
      %v385 = vld [vmem:[#allocation2 + $0x48] sm:$0xff]
      %v386 = vld [vmem:[#allocation2 + $0x50] sm:$0xff]
      %v387 = vld [vmem:[#allocation2 + $0x58] sm:$0xff]
      %v388 = vld [vmem:[#allocation2 + $0x60] sm:$0xff]
      %v389 = vld [vmem:[#allocation2 + $0x68] sm:$0xff]
      %v390 = vld [vmem:[#allocation2 + $0x70] sm:$0xff]
      %v391 = vld [vmem:[#allocation2 + $0x78] sm:$0xff]
      %v392 = vpack.c.bf16 %v377, %v376
      %v393 = vpack.c.bf16 %v379, %v378
      %v394 = vpack.c.bf16 %v381, %v380
      %v395 = vpack.c.bf16 %v383, %v382
      %v396 = vpack.c.bf16 %v385, %v384
      %v397 = vpack.c.bf16 %v387, %v386
      %v398 = vpack.c.bf16 %v389, %v388
      %v399 = vpack.c.bf16 %v391, %v390
      %v400 = vld [vmem:[#allocation8] sm:$0xf]
      %v401 = vld [vmem:[#allocation8 + $0x4] sm:$0xf]
      %v402 = vld [vmem:[#allocation8 + $0x8] sm:$0xf]
      %v403 = vld [vmem:[#allocation8 + $0xc] sm:$0xf]
      %v404 = vld [vmem:[#allocation8 + $0x10] sm:$0xf]
      %v405 = vld [vmem:[#allocation8 + $0x14] sm:$0xf]
      %v406 = vld [vmem:[#allocation8 + $0x18] sm:$0xf]
      %v407 = vld [vmem:[#allocation8 + $0x1c] sm:$0xf]
      %v408 = vld [vmem:[#allocation8 + $0x20] sm:$0xf]
      %v409 = vld [vmem:[#allocation8 + $0x24] sm:$0xf]
      %v410 = vld [vmem:[#allocation8 + $0x28] sm:$0xf]
      %v411 = vld [vmem:[#allocation8 + $0x2c] sm:$0xf]
      %v412 = vld [vmem:[#allocation8 + $0x30] sm:$0xf]
      %v413 = vld [vmem:[#allocation8 + $0x34] sm:$0xf]
      %v414 = vld [vmem:[#allocation8 + $0x38] sm:$0xf]
      %v415 = vld [vmem:[#allocation8 + $0x3c] sm:$0xf]
      %v416 = vld [vmem:[%s3] sm:$0x1]
      %v418 = vlaneseq
      %v419 = vshrl.u32 %v418, 7
      %v420 = vsub.s32 0, %v419
      %v421 = vrot.slane %v416, %v420
      %v439 = vunpack.c.l.b16 %v400
      %v440 = vunpack.c.l.b16 %v401
      %v441 = vunpack.c.l.b16 %v402
      %v442 = vunpack.c.l.b16 %v403
      %v443 = vunpack.c.l.b16 %v404
      %v444 = vunpack.c.l.b16 %v405
      %v445 = vunpack.c.l.b16 %v406
      %v446 = vunpack.c.l.b16 %v407
      %v447 = vunpack.c.l.b16 %v408
      %v448 = vunpack.c.l.b16 %v409
      %v449 = vunpack.c.l.b16 %v410
      %v450 = vunpack.c.l.b16 %v411
      %v451 = vunpack.c.l.b16 %v412
      %v452 = vunpack.c.l.b16 %v413
      %v453 = vunpack.c.l.b16 %v414
      %v454 = vunpack.c.l.b16 %v415
      %v455 = vpack.c.b16 %v440, %v439
      %v456 = vpack.c.b16 %v442, %v441
      %v457 = vpack.c.b16 %v444, %v443
      %v458 = vpack.c.b16 %v446, %v445
      %v459 = vpack.c.b16 %v448, %v447
      %v460 = vpack.c.b16 %v450, %v449
      %v461 = vpack.c.b16 %v452, %v451
      %v462 = vpack.c.b16 %v454, %v453
      %471 = vmatprep.subr.bf16.mxu0 0
      %472 = vmatpush1.bf16.msra.mxu0 %v455
      %473 = vmatprep.subr.bf16.mxu0 0
      %474 = vmatpush1.bf16.msra.mxu0 %v456
      %475 = vmatprep.subr.bf16.mxu0 0
      %476 = vmatpush1.bf16.msra.mxu0 %v457
      %477 = vmatprep.subr.bf16.mxu0 0
      %478 = vmatpush1.bf16.msra.mxu0 %v458
      %479 = vmatprep.subr.bf16.mxu0 0
      %480 = vmatpush1.bf16.msra.mxu0 %v459
      %481 = vmatprep.subr.bf16.mxu0 0
      %482 = vmatpush1.bf16.msra.mxu0 %v460
      %483 = vmatprep.subr.bf16.mxu0 0
      %484 = vmatpush1.bf16.msra.mxu0 %v461
      %485 = vmatprep.subr.bf16.mxu0 0
      %486 = vmatpush1.bf16.msra.mxu0 %v462
      %487 = vmatprep.subr.bf16.mxu0 0
      %488 = vmatpush1.bf16.msra.mxu0 0
      %489 = vmatprep.subr.bf16.mxu0 0
      %490 = vmatpush1.bf16.msra.mxu0 0
      %491 = vmatprep.subr.bf16.mxu0 0
      %492 = vmatpush1.bf16.msra.mxu0 0
      %493 = vmatprep.subr.bf16.mxu0 0
      %494 = vmatpush1.bf16.msra.mxu0 0
      %495 = vmatprep.subr.bf16.mxu0 0
      %496 = vmatpush1.bf16.msra.mxu0 0
      %497 = vmatprep.subr.bf16.mxu0 0
      %498 = vmatpush1.bf16.msra.mxu0 0
      %499 = vmatprep.subr.bf16.mxu0 0
      %500 = vmatpush1.bf16.msra.mxu0 0
      %501 = vmatprep.subr.bf16.mxu0 0
      %502 = vmatpush1.bf16.msra.mxu0 0
      %503 = vmatprep.mubr.bf16.mxu0 0
      %504 = vmatmul.mubr.bf16.gmra.mrb[0].mxu0 %v392
      %v505 = vpop.f32.mrb[0].mxu0
      %v506 = vadd.f32 %v421, %v505
      %v507 = vpop.f32.mrb[0].mxu0
      %v508 = vpop.f32.mrb[0].mxu0
      %v509 = vadd.f32 %v421, %v508
      %v510 = vpop.f32.mrb[0].mxu0
      %511 = vmatprep.mubr.bf16.mxu0 0
      %512 = vmatmul.mubr.bf16.gmra.mrb[0].mxu0 %v393
      %v513 = vpop.f32.mrb[0].mxu0
      %v514 = vadd.f32 %v421, %v513
      %v515 = vpop.f32.mrb[0].mxu0
      %v516 = vpop.f32.mrb[0].mxu0
      %v517 = vadd.f32 %v421, %v516
      %v518 = vpop.f32.mrb[0].mxu0
      %519 = vmatprep.mubr.bf16.mxu0 0
      %520 = vmatmul.mubr.bf16.gmra.mrb[0].mxu0 %v394
      %v521 = vpop.f32.mrb[0].mxu0
      %v522 = vadd.f32 %v421, %v521
      %v523 = vpop.f32.mrb[0].mxu0
      %v524 = vpop.f32.mrb[0].mxu0
      %v525 = vadd.f32 %v421, %v524
      %v526 = vpop.f32.mrb[0].mxu0
      %527 = vmatprep.mubr.bf16.mxu0 0
      %528 = vmatmul.mubr.bf16.gmra.mrb[0].mxu0 %v395
      %v529 = vpop.f32.mrb[0].mxu0
      %v530 = vadd.f32 %v421, %v529
      %v531 = vpop.f32.mrb[0].mxu0
      %v532 = vpop.f32.mrb[0].mxu0
      %v533 = vadd.f32 %v421, %v532
      %v534 = vpop.f32.mrb[0].mxu0
      %535 = vmatprep.mubr.bf16.mxu0 0
      %536 = vmatmul.mubr.bf16.gmra.mrb[0].mxu0 %v396
      %v537 = vpop.f32.mrb[0].mxu0
      %v538 = vadd.f32 %v421, %v537
      %v539 = vpop.f32.mrb[0].mxu0
      %v540 = vpop.f32.mrb[0].mxu0
      %v541 = vadd.f32 %v421, %v540
      %v542 = vpop.f32.mrb[0].mxu0
      %543 = vmatprep.mubr.bf16.mxu0 0
      %544 = vmatmul.mubr.bf16.gmra.mrb[0].mxu0 %v397
      %v545 = vpop.f32.mrb[0].mxu0
      %v546 = vadd.f32 %v421, %v545
      %v547 = vpop.f32.mrb[0].mxu0
      %v548 = vpop.f32.mrb[0].mxu0
      %v549 = vadd.f32 %v421, %v548
      %v550 = vpop.f32.mrb[0].mxu0
      %551 = vmatprep.mubr.bf16.mxu0 0
      %552 = vmatmul.mubr.bf16.gmra.mrb[0].mxu0 %v398
      %v553 = vpop.f32.mrb[0].mxu0
      %v554 = vadd.f32 %v421, %v553
      %v555 = vpop.f32.mrb[0].mxu0
      %v556 = vpop.f32.mrb[0].mxu0
      %v557 = vadd.f32 %v421, %v556
      %v558 = vpop.f32.mrb[0].mxu0
      %559 = vmatprep.mubr.bf16.mxu0 0
      %560 = vmatmul.mubr.bf16.gmra.mrb[0].mxu0 %v399
      %v561 = vpop.f32.mrb[0].mxu0
      %v562 = vadd.f32 %v421, %v561
      %v563 = vpop.f32.mrb[0].mxu0
      %v564 = vpop.f32.mrb[0].mxu0
      %v565 = vadd.f32 %v421, %v564
      %v566 = vpop.f32.mrb[0].mxu0
      %567 = vdwg.mxu0
      %v568 = vmax.f32 %v506, 0.0
      %v569 = vmax.f32 %v509, 0.0
      %v570 = vmax.f32 %v514, 0.0
      %v571 = vmax.f32 %v517, 0.0
      %v572 = vmax.f32 %v522, 0.0
      %v573 = vmax.f32 %v525, 0.0
      %v574 = vmax.f32 %v530, 0.0
      %v575 = vmax.f32 %v533, 0.0
      %v576 = vmax.f32 %v538, 0.0
      %v577 = vmax.f32 %v541, 0.0
      %v578 = vmax.f32 %v546, 0.0
      %v579 = vmax.f32 %v549, 0.0
      %v580 = vmax.f32 %v554, 0.0
      %v581 = vmax.f32 %v557, 0.0
      %v582 = vmax.f32 %v562, 0.0
      %v583 = vmax.f32 %v565, 0.0
      %584 = vst [vmem:[#allocation11] sm:$0xff] %v568
      %585 = vst [vmem:[#allocation11 + $0x8] sm:$0xff] %v569
      %586 = vst [vmem:[#allocation11 + $0x10] sm:$0xff] %v570
      %587 = vst [vmem:[#allocation11 + $0x18] sm:$0xff] %v571
      %588 = vst [vmem:[#allocation11 + $0x20] sm:$0xff] %v572
      %589 = vst [vmem:[#allocation11 + $0x28] sm:$0xff] %v573
      %590 = vst [vmem:[#allocation11 + $0x30] sm:$0xff] %v574
      %591 = vst [vmem:[#allocation11 + $0x38] sm:$0xff] %v575
      %592 = vst [vmem:[#allocation11 + $0x40] sm:$0xff] %v576
      %593 = vst [vmem:[#allocation11 + $0x48] sm:$0xff] %v577
      %594 = vst [vmem:[#allocation11 + $0x50] sm:$0xff] %v578
      %595 = vst [vmem:[#allocation11 + $0x58] sm:$0xff] %v579
      %596 = vst [vmem:[#allocation11 + $0x60] sm:$0xff] %v580
      %597 = vst [vmem:[#allocation11 + $0x68] sm:$0xff] %v581
      %598 = vst [vmem:[#allocation11 + $0x70] sm:$0xff] %v582
      %599 = vst [vmem:[#allocation11 + $0x78] sm:$0xff] %v583
      %v600 = vpack.c.bf16 %v569, %v568
      %v601 = vpack.c.bf16 %v571, %v570
      %v602 = vpack.c.bf16 %v573, %v572
      %v603 = vpack.c.bf16 %v575, %v574
      %v604 = vpack.c.bf16 %v577, %v576
      %v605 = vpack.c.bf16 %v579, %v578
      %v606 = vpack.c.bf16 %v581, %v580
      %v607 = vpack.c.bf16 %v583, %v582
      %v608 = vld [vmem:[#allocation9] sm:$0xf]
      %v609 = vld [vmem:[#allocation9 + $0x4] sm:$0xf]
      %v610 = vld [vmem:[#allocation9 + $0x8] sm:$0xf]
      %v611 = vld [vmem:[#allocation9 + $0xc] sm:$0xf]
      %v612 = vld [vmem:[#allocation9 + $0x10] sm:$0xf]
      %v613 = vld [vmem:[#allocation9 + $0x14] sm:$0xf]
      %v614 = vld [vmem:[#allocation9 + $0x18] sm:$0xf]
      %v615 = vld [vmem:[#allocation9 + $0x1c] sm:$0xf]
      %v616 = vld [vmem:[#allocation9 + $0x20] sm:$0xf]
      %v617 = vld [vmem:[#allocation9 + $0x24] sm:$0xf]
      %v618 = vld [vmem:[#allocation9 + $0x28] sm:$0xf]
      %v619 = vld [vmem:[#allocation9 + $0x2c] sm:$0xf]
      %v620 = vld [vmem:[#allocation9 + $0x30] sm:$0xf]
      %v621 = vld [vmem:[#allocation9 + $0x34] sm:$0xf]
      %v622 = vld [vmem:[#allocation9 + $0x38] sm:$0xf]
      %v623 = vld [vmem:[#allocation9 + $0x3c] sm:$0xf]
      %v640 = vunpack.c.l.b16 %v608
      %v641 = vunpack.c.l.b16 %v609
      %v642 = vunpack.c.l.b16 %v610
      %v643 = vunpack.c.l.b16 %v611
      %v644 = vunpack.c.l.b16 %v612
      %v645 = vunpack.c.l.b16 %v613
      %v646 = vunpack.c.l.b16 %v614
      %v647 = vunpack.c.l.b16 %v615
      %v648 = vunpack.c.l.b16 %v616
      %v649 = vunpack.c.l.b16 %v617
      %v650 = vunpack.c.l.b16 %v618
      %v651 = vunpack.c.l.b16 %v619
      %v652 = vunpack.c.l.b16 %v620
      %v653 = vunpack.c.l.b16 %v621
      %v654 = vunpack.c.l.b16 %v622
      %v655 = vunpack.c.l.b16 %v623
      %v656 = vpack.c.b16 %v641, %v640
      %v657 = vpack.c.b16 %v643, %v642
      %v658 = vpack.c.b16 %v645, %v644
      %v659 = vpack.c.b16 %v647, %v646
      %v660 = vpack.c.b16 %v649, %v648
      %v661 = vpack.c.b16 %v651, %v650
      %v662 = vpack.c.b16 %v653, %v652
      %v663 = vpack.c.b16 %v655, %v654
      %672 = vmatprep.subr.bf16.mxu0 0
      %673 = vmatpush1.bf16.msra.mxu0 %v656
      %674 = vmatprep.subr.bf16.mxu0 0
      %675 = vmatpush1.bf16.msra.mxu0 %v657
      %676 = vmatprep.subr.bf16.mxu0 0
      %677 = vmatpush1.bf16.msra.mxu0 %v658
      %678 = vmatprep.subr.bf16.mxu0 0
      %679 = vmatpush1.bf16.msra.mxu0 %v659
      %680 = vmatprep.subr.bf16.mxu0 0
      %681 = vmatpush1.bf16.msra.mxu0 %v660
      %682 = vmatprep.subr.bf16.mxu0 0
      %683 = vmatpush1.bf16.msra.mxu0 %v661
      %684 = vmatprep.subr.bf16.mxu0 0
      %685 = vmatpush1.bf16.msra.mxu0 %v662
      %686 = vmatprep.subr.bf16.mxu0 0
      %687 = vmatpush1.bf16.msra.mxu0 %v663
      %688 = vmatprep.subr.bf16.mxu0 0
      %689 = vmatpush1.bf16.msra.mxu0 0
      %690 = vmatprep.subr.bf16.mxu0 0
      %691 = vmatpush1.bf16.msra.mxu0 0
      %692 = vmatprep.subr.bf16.mxu0 0
      %693 = vmatpush1.bf16.msra.mxu0 0
      %694 = vmatprep.subr.bf16.mxu0 0
      %695 = vmatpush1.bf16.msra.mxu0 0
      %696 = vmatprep.subr.bf16.mxu0 0
      %697 = vmatpush1.bf16.msra.mxu0 0
      %698 = vmatprep.subr.bf16.mxu0 0
      %699 = vmatpush1.bf16.msra.mxu0 0
      %700 = vmatprep.subr.bf16.mxu0 0
      %701 = vmatpush1.bf16.msra.mxu0 0
      %702 = vmatprep.subr.bf16.mxu0 0
      %703 = vmatpush1.bf16.msra.mxu0 0
      %704 = vmatprep.mubr.bf16.mxu0 0
      %705 = vmatmul.mubr.bf16.gmra.mrb[0].mxu0 %v600
      %v706 = vpop.f32.mrb[0].mxu0
      %v707 = vadd.f32 0.0, %v706
      %v708 = vpop.f32.mrb[0].mxu0
      %v709 = vpop.f32.mrb[0].mxu0
      %v710 = vadd.f32 0.0, %v709
      %v711 = vpop.f32.mrb[0].mxu0
      %712 = vmatprep.mubr.bf16.mxu0 0
      %713 = vmatmul.mubr.bf16.gmra.mrb[0].mxu0 %v601
      %v714 = vpop.f32.mrb[0].mxu0
      %v715 = vadd.f32 0.0, %v714
      %v716 = vpop.f32.mrb[0].mxu0
      %v717 = vpop.f32.mrb[0].mxu0
      %v718 = vadd.f32 0.0, %v717
      %v719 = vpop.f32.mrb[0].mxu0
      %720 = vmatprep.mubr.bf16.mxu0 0
      %721 = vmatmul.mubr.bf16.gmra.mrb[0].mxu0 %v602
      %v722 = vpop.f32.mrb[0].mxu0
      %v723 = vadd.f32 0.0, %v722
      %v724 = vpop.f32.mrb[0].mxu0
      %v725 = vpop.f32.mrb[0].mxu0
      %v726 = vadd.f32 0.0, %v725
      %v727 = vpop.f32.mrb[0].mxu0
      %728 = vmatprep.mubr.bf16.mxu0 0
      %729 = vmatmul.mubr.bf16.gmra.mrb[0].mxu0 %v603
      %v730 = vpop.f32.mrb[0].mxu0
      %v731 = vadd.f32 0.0, %v730
      %v732 = vpop.f32.mrb[0].mxu0
      %v733 = vpop.f32.mrb[0].mxu0
      %v734 = vadd.f32 0.0, %v733
      %v735 = vpop.f32.mrb[0].mxu0
      %736 = vmatprep.mubr.bf16.mxu0 0
      %737 = vmatmul.mubr.bf16.gmra.mrb[0].mxu0 %v604
      %v738 = vpop.f32.mrb[0].mxu0
      %v739 = vadd.f32 0.0, %v738
      %v740 = vpop.f32.mrb[0].mxu0
      %v741 = vpop.f32.mrb[0].mxu0
      %v742 = vadd.f32 0.0, %v741
      %v743 = vpop.f32.mrb[0].mxu0
      %744 = vmatprep.mubr.bf16.mxu0 0
      %745 = vmatmul.mubr.bf16.gmra.mrb[0].mxu0 %v605
      %v746 = vpop.f32.mrb[0].mxu0
      %v747 = vadd.f32 0.0, %v746
      %v748 = vpop.f32.mrb[0].mxu0
      %v749 = vpop.f32.mrb[0].mxu0
      %v750 = vadd.f32 0.0, %v749
      %v751 = vpop.f32.mrb[0].mxu0
      %752 = vmatprep.mubr.bf16.mxu0 0
      %753 = vmatmul.mubr.bf16.gmra.mrb[0].mxu0 %v606
      %v754 = vpop.f32.mrb[0].mxu0
      %v755 = vadd.f32 0.0, %v754
      %v756 = vpop.f32.mrb[0].mxu0
      %v757 = vpop.f32.mrb[0].mxu0
      %v758 = vadd.f32 0.0, %v757
      %v759 = vpop.f32.mrb[0].mxu0
      %760 = vmatprep.mubr.bf16.mxu0 0
      %761 = vmatmul.mubr.bf16.gmra.mrb[0].mxu0 %v607
      %v762 = vpop.f32.mrb[0].mxu0
      %v763 = vadd.f32 0.0, %v762
      %v764 = vpop.f32.mrb[0].mxu0
      %v765 = vpop.f32.mrb[0].mxu0
      %v766 = vadd.f32 0.0, %v765
      %v767 = vpop.f32.mrb[0].mxu0
      %768 = vdwg.mxu0
      %v769 = vpack.c.bf16 %v710, %v707
      %v770 = vpack.c.bf16 %v718, %v715
      %v771 = vpack.c.bf16 %v726, %v723
      %v772 = vpack.c.bf16 %v734, %v731
      %v773 = vpack.c.bf16 %v742, %v739
      %v774 = vpack.c.bf16 %v750, %v747
      %v775 = vpack.c.bf16 %v758, %v755
      %v776 = vpack.c.bf16 %v766, %v763
      %v785 = vunpack.c.l.b16 %v769
      %v786 = vunpack.c.h.b16 %v769
      %v787 = vunpack.c.l.b16 %v770
      %v788 = vunpack.c.h.b16 %v770
      %v789 = vunpack.c.l.b16 %v771
      %v790 = vunpack.c.h.b16 %v771
      %v791 = vunpack.c.l.b16 %v772
      %v792 = vunpack.c.h.b16 %v772
      %v793 = vunpack.c.l.b16 %v773
      %v794 = vunpack.c.h.b16 %v773
      %v795 = vunpack.c.l.b16 %v774
      %v796 = vunpack.c.h.b16 %v774
      %v797 = vunpack.c.l.b16 %v775
      %v798 = vunpack.c.h.b16 %v775
      %v799 = vunpack.c.l.b16 %v776
      %v800 = vunpack.c.h.b16 %v776
      %v801 = vpack.c.b16 %v785, %v785
      %v802 = vpack.c.b16 %v786, %v786
      %v803 = vpack.c.b16 %v787, %v787
      %v804 = vpack.c.b16 %v788, %v788
      %v805 = vpack.c.b16 %v789, %v789
      %v806 = vpack.c.b16 %v790, %v790
      %v807 = vpack.c.b16 %v791, %v791
      %v808 = vpack.c.b16 %v792, %v792
      %v809 = vpack.c.b16 %v793, %v793
      %v810 = vpack.c.b16 %v794, %v794
      %v811 = vpack.c.b16 %v795, %v795
      %v812 = vpack.c.b16 %v796, %v796
      %v813 = vpack.c.b16 %v797, %v797
      %v814 = vpack.c.b16 %v798, %v798
      %v815 = vpack.c.b16 %v799, %v799
      %v816 = vpack.c.b16 %v800, %v800
      %833 = vst [vmem:[#allocation12] sm:$0xf] %v801
      %834 = vst [vmem:[#allocation12 + $0x4] sm:$0xf] %v802
      %835 = vst [vmem:[#allocation12 + $0x8] sm:$0xf] %v803
      %836 = vst [vmem:[#allocation12 + $0xc] sm:$0xf] %v804
      %837 = vst [vmem:[#allocation12 + $0x10] sm:$0xf] %v805
      %838 = vst [vmem:[#allocation12 + $0x14] sm:$0xf] %v806
      %839 = vst [vmem:[#allocation12 + $0x18] sm:$0xf] %v807
      %840 = vst [vmem:[#allocation12 + $0x1c] sm:$0xf] %v808
      %841 = vst [vmem:[#allocation12 + $0x20] sm:$0xf] %v809
      %842 = vst [vmem:[#allocation12 + $0x24] sm:$0xf] %v810
      %843 = vst [vmem:[#allocation12 + $0x28] sm:$0xf] %v811
      %844 = vst [vmem:[#allocation12 + $0x2c] sm:$0xf] %v812
      %845 = vst [vmem:[#allocation12 + $0x30] sm:$0xf] %v813
      %846 = vst [vmem:[#allocation12 + $0x34] sm:$0xf] %v814
      %847 = vst [vmem:[#allocation12 + $0x38] sm:$0xf] %v815
      %848 = vst [vmem:[#allocation12 + $0x3c] sm:$0xf] %v816
    $region45: #{tpu_custom_call.1} parent=1 // pred_fallthru
      _
    // Predicated region
    $region46: #{tpu_custom_call.1} parent=1 // pred_check
      _
    $region47: #{tpu_custom_call.1} parent=1 // pred_check_branch
      %850 = sbr.rel (0) target = $region49
    $region48: #{tpu_custom_call.1} parent=1 // pred_region
      %s852 = ssub.s32 2048, 2048
      %853 = vsyncadd [#allocation5], %s852
      %s854 = sshll.u32 [#allocation11], 4
      %s855 = int_to_ptr.vmem [resolvable:$true] %s854
      %860 = dma.vmem_to_hbm [thread:$0]  %s855, 2048, %s5, [#allocation5], 128, 128, 8
    $region49: #{tpu_custom_call.1} parent=1 // pred_fallthru
      _
    // Predicated region
    $region50: #{tpu_custom_call.1} parent=1 // pred_check
      _
    $region51: #{tpu_custom_call.1} parent=1 // pred_check_branch
      %862 = sbr.rel (0) target = $region53
    $region52: #{tpu_custom_call.1} parent=1 // pred_region
      %s864 = ssub.s32 1024, 1024
      %865 = vsyncadd [#allocation13], %s864
      %s866 = sshll.u32 [#allocation12], 4
      %s867 = int_to_ptr.vmem [resolvable:$true] %s866
      %872 = dma.vmem_to_hbm [thread:$0]  %s867, 1024, %s6, [#allocation13], 64, 64, 4
    $region53: #{tpu_custom_call.1} parent=1 // pred_fallthru
      _
    // Predicated region
    $region54: #{tpu_custom_call.1} parent=1 // pred_check
      _
    $region55: #{tpu_custom_call.1} parent=1 // pred_check_branch
      %874 = sbr.rel (0) target = $region57
    $region56: #{tpu_custom_call.1} parent=1 // pred_region
      %875 = dma.done [#allocation5], 2048
    $region57: #{tpu_custom_call.1} parent=1 // pred_fallthru
      _
    // Predicated region
    $region58: #{tpu_custom_call.1} parent=1 // pred_check
      _
    $region59: #{tpu_custom_call.1} parent=1 // pred_check_branch
      %877 = sbr.rel (0) target = $region61
    $region60: #{tpu_custom_call.1} parent=1 // pred_region
      %878 = dma.done [#allocation13], 1024
    $region61: #{tpu_custom_call.1} parent=1 // pred_fallthru
      _
    %879 = vsyncpa [#allocation4], 1
    %880 = vsyncpa [#allocation7], 1
    %881 = vsyncpa [#allocation10], 1
    %882 = vsyncpa [#allocation5], 1
    %883 = vsyncpa [#allocation13], 1

</llo_original>
